<compile_context>
chip_gen: v6e
topology: v6e:2x2x1
jax: 0.10.0
libtpu: 0.0.40
codegen_flags: <defaults>
</compile_context>

<pallas_src>
import math
import functools

import jax
import jax.numpy as jnp
from jax.experimental import pallas as pl
from jax.experimental.pallas import tpu as pltpu


def make_pe_table(d_model: int, max_len: int) -> jnp.ndarray:
    """Deterministic sinusoidal PE buffer, shape [max_len, 1, d_model]."""
    position = jnp.arange(max_len, dtype=jnp.float32)[:, None]            # [L,1]
    div_term = jnp.exp(
        jnp.arange(0, d_model, 2, dtype=jnp.float32)
        * (-math.log(10000.0) / d_model)
    )                                                                      # [D/2]
    pe = jnp.zeros((max_len, d_model), dtype=jnp.float32)
    pe = pe.at[:, 0::2].set(jnp.sin(position * div_term))
    pe = pe.at[:, 1::2].set(jnp.cos(position * div_term))
    return pe[:, None, :]                                                  # [L,1,D]


def _pe_dropout_kernel(seed_ref, x_ref, pe_ref, o_ref, *, p: float,
                       training: bool, batch: int):
    # x_ref/o_ref: (tile_s, B*D)    pe_ref: (tile_s, D)    seed_ref: SMEM (1,) i32
    tile_s, bd = x_ref.shape

    pe_blk = pe_ref[...]                                   # (tile_s, D)
    if batch > 1:
        # x[s] is laid out [b0 d0..dD-1, b1 d0..dD-1, ...] -> repeat pe row B times
        pe_blk = jnp.concatenate([pe_blk] * batch, axis=1)  # (tile_s, B*D)

    y = x_ref[...] + pe_blk

    if training and p > 0.0:
        if p >= 1.0:
            # torch.nn.Dropout(p=1) zeros everything.
            y = jnp.zeros_like(y)
        else:
            # --- stateless counter-based hash (pure int32 VPU ops) ----------
            base_row = pl.program_id(0) * tile_s
            rows = jax.lax.broadcasted_iota(jnp.int32, (tile_s, bd), 0) + base_row
            cols = jax.lax.broadcasted_iota(jnp.int32, (tile_s, bd), 1)
            idx = rows * jnp.int32(bd) + cols               # global element index

            seed = seed_ref[0]
            h = idx ^ (seed * jnp.int32(-1640531527))       # 0x9E3779B9
            # murmur3-style finalizer; logical right-shift emulated by
            # arithmetic shift + mask (keeps everything signed-int32 only).
            h = h ^ ((h >> 16) & jnp.int32(0xFFFF))
            h = h * jnp.int32(-2048144789)                  # 0x85EBCA6B
            h = h ^ ((h >> 13) & jnp.int32((1 << 19) - 1))
            h = h * jnp.int32(-1028477387)                  # 0xC2B2AE35
            h = h ^ ((h >> 16) & jnp.int32(0xFFFF))

            # h is uniform over int32; choose signed threshold t so that
            # P(h >= t) == 1 - p  (keep probability).
            t = int(round((p - 0.5) * 4294967296.0))
            t = max(-(2 ** 31), min(2 ** 31 - 1, t))
            keep = h >= jnp.int32(t)

            scale = jnp.asarray(1.0 / (1.0 - p), dtype=y.dtype)
            y = jnp.where(keep, y * scale, jnp.zeros_like(y))

    o_ref[...] = y.astype(o_ref.dtype)


def _choose_tile_s(S: int, row_bytes: int, target_bytes: int = 2 << 20) -> int:
    """Sequence-tile size: ~2 MiB per x block, multiple of 8 (or == S if tiny)."""
    if S <= 8:
        return S
    t = min(S, max(8, target_bytes // max(row_bytes, 1)))
    t = max(8, (t // 8) * 8)
    return t


def cosine_positional_encoding(x, pe, *, seed: int = 0, p: float = 0.1,
                               training: bool = True):
    """x: [S, B, D]; pe: [max_len, 1, D] (max_len >= S). Returns [S, B, D]."""
    S, B, D = x.shape
    BD = B * D

    # Lane-dense view of x (free, row-major) and dtype-matched pe slice.
    x2 = x.reshape(S, BD)
    pe_s = pe[:S, 0, :].astype(x.dtype)                    # [S, D]

    row_bytes = BD * x2.dtype.itemsize
    tile_s = _choose_tile_s(S, row_bytes)
    grid = (pl.cdiv(S, tile_s),)

    seed_arr = jnp.array([seed], dtype=jnp.int32)
    kernel = functools.partial(_pe_dropout_kernel, p=float(p),
                               training=bool(training), batch=B)

    y2 = pl.pallas_call(
        kernel,
        out_shape=jax.ShapeDtypeStruct((S, BD), x.dtype),
        grid_spec=pltpu.PrefetchScalarGridSpec(
            num_scalar_prefetch=1,
            grid=grid,
            in_specs=[
                pl.BlockSpec((tile_s, BD), lambda i, seed: (i, 0)),
                pl.BlockSpec((tile_s, D), lambda i, seed: (i, 0)),
            ],
            out_specs=pl.BlockSpec((tile_s, BD), lambda i, seed: (i, 0)),
        ),
        compiler_params=pltpu.CompilerParams(
            dimension_semantics=("parallel",),   # independent tiles -> both v7x TCs
        ),
    )(seed_arr, x2, pe_s)

    return y2.reshape(S, B, D)


if __name__ == "__main__":
    d_model = 32
    max_len = 64
    seq_len = 8
    batch = 2
    p_drop = 0.1

    key = jax.random.PRNGKey(0)
    x = jax.random.normal(key, (seq_len, batch, d_model), dtype=jnp.float32)
    pe = make_pe_table(d_model, max_len)

    # Training-mode forward (dropout active, matching nn.Module default mode).
    out = cosine_positional_encoding(x, pe, seed=0, p=p_drop, training=True)
    out = jax.block_until_ready(out)

    # Eval-mode forward must equal x + pe exactly.
    out_eval = cosine_positional_encoding(x, pe, seed=0, p=p_drop, training=False)
    out_eval = jax.block_until_ready(out_eval)

    ref_eval = x + pe[:seq_len]
    assert out.shape == (seq_len, batch, d_model)
    assert jnp.allclose(out_eval, ref_eval, atol=1e-6), "eval-mode mismatch"

    # Structural dropout check: every training output element is either 0
    # (dropped) or (x+pe)/(1-p) (kept & rescaled).
    ref_scaled = ref_eval / (1.0 - p_drop)
    ok = jnp.logical_or(jnp.isclose(out, 0.0, atol=1e-6),
                        jnp.isclose(out, ref_scaled, atol=1e-5))
    assert bool(jnp.all(ok)), "training-mode dropout structure mismatch"

    print("KERNEL_OK")
</pallas_src>

<mosaic_0001>
module attributes {stable_mosaic.version = 11 : i64} {
  func.func @_pe_dropout_kernel(%arg0: i32, %arg1: memref<1xi32, #tpu.memory_space<smem>>, %arg2: memref<8x64xf32, #tpu.memory_space<vmem>>, %arg3: memref<8x32xf32, #tpu.memory_space<vmem>>, %arg4: memref<8x64xf32, #tpu.memory_space<vmem>>) attributes {dimension_semantics = [#tpu.dimension_semantics<parallel>], iteration_bounds = array<i64: 1>, scalar_prefetch = 1 : i64, scratch_operands = 0 : i64, tpu.core_type = #tpu.core_type<tc>, window_params = [{transform_indices = @transform_0, window_bounds = array<i64: 8, 64>}, {transform_indices = @transform_1, window_bounds = array<i64: 8, 32>}, {transform_indices = @transform_2, window_bounds = array<i64: 8, 64>}]} {
    %c0 = arith.constant 0 : index
    %c0_0 = arith.constant 0 : index
    %0 = vector.load %arg3[%c0, %c0_0] : memref<8x32xf32, #tpu.memory_space<vmem>>, vector<8x32xf32>
    %1 = tpu.concatenate %0, %0 in 1 : vector<8x32xf32>, vector<8x32xf32> -> vector<8x64xf32>
    %c0_1 = arith.constant 0 : index
    %c0_2 = arith.constant 0 : index
    %2 = vector.load %arg2[%c0_1, %c0_2] : memref<8x64xf32, #tpu.memory_space<vmem>>, vector<8x64xf32>
    %3 = arith.addf %2, %1 : vector<8x64xf32>
    %c8_i32 = arith.constant 8 : i32
    %4 = arith.muli %arg0, %c8_i32 : i32
    %5 = tpu.iota {dimensions = array<i32: 0>} : vector<8x64xi32>
    %6 = vector.broadcast %4 : i32 to vector<8x64xi32>
    %7 = arith.addi %5, %6 : vector<8x64xi32>
    %8 = tpu.iota {dimensions = array<i32: 1>} : vector<8x64xi32>
    %c64_i32 = arith.constant 64 : i32
    %9 = vector.broadcast %c64_i32 : i32 to vector<8x64xi32>
    %10 = arith.muli %7, %9 : vector<8x64xi32>
    %11 = arith.addi %10, %8 : vector<8x64xi32>
    %c0_3 = arith.constant 0 : index
    %12 = memref.load %arg1[%c0_3] : memref<1xi32, #tpu.memory_space<smem>>
    %c-1640531527_i32 = arith.constant -1640531527 : i32
    %13 = arith.muli %12, %c-1640531527_i32 : i32
    %14 = vector.broadcast %13 : i32 to vector<8x64xi32>
    %15 = arith.xori %11, %14 : vector<8x64xi32>
    %c16_i32 = arith.constant 16 : i32
    %16 = vector.broadcast %c16_i32 : i32 to vector<8x64xi32>
    %17 = arith.shrsi %15, %16 : vector<8x64xi32>
    %c65535_i32 = arith.constant 65535 : i32
    %18 = vector.broadcast %c65535_i32 : i32 to vector<8x64xi32>
    %19 = arith.andi %17, %18 : vector<8x64xi32>
    %20 = arith.xori %15, %19 : vector<8x64xi32>
    %c-2048144789_i32 = arith.constant -2048144789 : i32
    %21 = vector.broadcast %c-2048144789_i32 : i32 to vector<8x64xi32>
    %22 = arith.muli %20, %21 : vector<8x64xi32>
    %c13_i32 = arith.constant 13 : i32
    %23 = vector.broadcast %c13_i32 : i32 to vector<8x64xi32>
    %24 = arith.shrsi %22, %23 : vector<8x64xi32>
    %c524287_i32 = arith.constant 524287 : i32
    %25 = vector.broadcast %c524287_i32 : i32 to vector<8x64xi32>
    %26 = arith.andi %24, %25 : vector<8x64xi32>
    %27 = arith.xori %22, %26 : vector<8x64xi32>
    %c-1028477387_i32 = arith.constant -1028477387 : i32
    %28 = vector.broadcast %c-1028477387_i32 : i32 to vector<8x64xi32>
    %29 = arith.muli %27, %28 : vector<8x64xi32>
    %c16_i32_4 = arith.constant 16 : i32
    %30 = vector.broadcast %c16_i32_4 : i32 to vector<8x64xi32>
    %31 = arith.shrsi %29, %30 : vector<8x64xi32>
    %c65535_i32_5 = arith.constant 65535 : i32
    %32 = vector.broadcast %c65535_i32_5 : i32 to vector<8x64xi32>
    %33 = arith.andi %31, %32 : vector<8x64xi32>
    %34 = arith.xori %29, %33 : vector<8x64xi32>
    %c-1717986918_i32 = arith.constant -1717986918 : i32
    %35 = vector.broadcast %c-1717986918_i32 : i32 to vector<8x64xi32>
    %36 = arith.cmpi sge, %34, %35 : vector<8x64xi32>
    %cst = arith.constant 1.11111116 : f32
    %37 = vector.broadcast %cst : f32 to vector<8x64xf32>
    %38 = arith.mulf %3, %37 : vector<8x64xf32>
    %cst_6 = arith.constant 0.000000e+00 : f32
    %39 = vector.broadcast %cst_6 : f32 to vector<8x64xf32>
    %40 = arith.select %36, %38, %39 : vector<8x64xi1>, vector<8x64xf32>
    %c0_7 = arith.constant 0 : index
    %c0_8 = arith.constant 0 : index
    %41 = vector.load %arg4[%c0_7, %c0_8] : memref<8x64xf32, #tpu.memory_space<vmem>>, vector<8x64xf32>
    tpu.vector_store %arg4[%c0_7, %c0_8], %40 {strides = array<i32>} : memref<8x64xf32, #tpu.memory_space<vmem>>, vector<8x64xf32>,
    return
  }
  func.func @transform_0(%arg0: i32, %arg1: memref<1xi32, #tpu.memory_space<smem>>) -> (i32, i32) {
    %c0_i32 = arith.constant 0 : i32
    %c0_i32_0 = arith.constant 0 : i32
    return %arg0, %c0_i32 : i32, i32
  }
  func.func @transform_1(%arg0: i32, %arg1: memref<1xi32, #tpu.memory_space<smem>>) -> (i32, i32) {
    %c0_i32 = arith.constant 0 : i32
    %c0_i32_0 = arith.constant 0 : i32
    return %arg0, %c0_i32 : i32, i32
  }
  func.func @transform_2(%arg0: i32, %arg1: memref<1xi32, #tpu.memory_space<smem>>) -> (i32, i32) {
    %c0_i32 = arith.constant 0 : i32
    %c0_i32_0 = arith.constant 0 : i32
    return %arg0, %c0_i32 : i32, i32
  }
}

</mosaic_0001>

<llo_original>
// kernel: tpu_custom_call.1
$region0: #{tpu_custom_call.1}
  #allocation0 [shape = 'u32[]', space=smem, size = 0x4, offset = 0x4, fixed_abs, tag = 'smem constant byte address 0x4 - core index']
  #allocation1 [shape = 'u32[144,128]{1,0:T(1,128)}', space=vmem, size = 0x12000, scoped, tag = 'internal scratch']
  #allocation2 [shape = 's32[1]{0}', space=sflag, size = 0x4, scoped, tag = 'scoped memory for tpu_custom_call.1']
  #allocation3 [shape = 's32[1]{0:T(128)S(6)}', space=smem, size = 0x200, scoped, tag = 'prefetched SMEM operand 0']
  %s0 = inlined_call_operand.<no memory space> [shape: s32[1], index: 0, kind: input, shape index: {}]
  %s1 = inlined_call_operand.hbm [shape: f32[8,64], index: 1, kind: input, shape index: {}]
  %s2 = inlined_call_operand.hbm [shape: f32[8,32], index: 2, kind: input, shape index: {}]
  %s3 = inlined_call_operand.hbm [shape: f32[8,64], index: 3, kind: output, shape index: {}]
  %s4 = sld [smem:[#allocation0]]
  $region26: #{tpu_custom_call.1} parent=0
    _
  %s6 = ssub.s32 1, %s4
  %s7 = scalar_select 0, %s6, %s4
  %8 = sst [smem:[#allocation3]] %s0
  $region1: #{tpu_custom_call.1} parent=0
    #allocation4 [shape = 'u8[4096]{0}', space=vmem, size = 0x1000, scoped, tag = 'input window, operand 1, single buffered']
    #allocation5 [shape = 's32[1]{0}', space=sflag, size = 0x4, scoped, tag = 'scoped memory for tpu_custom_call.1']
    #allocation6 [shape = 's32[1]{0}', space=sflag, size = 0x4, scoped, tag = 'scoped memory for tpu_custom_call.1']
    #allocation7 [shape = 'u8[4096]{0}', space=vmem, size = 0x1000, scoped, tag = 'input window, operand 2, single buffered']
    #allocation8 [shape = 's32[1]{0}', space=sflag, size = 0x4, scoped, tag = 'scoped memory for tpu_custom_call.1']
    #allocation9 [shape = 'u8[4096]{0}', space=vmem, size = 0x1000, scoped, tag = 'output window, operand 0, single buffered']
    %9 = vsyncpa [#allocation5], 0
    %10 = vsyncpa [#allocation8], 0
    %11 = vsyncpa [#allocation6], 0
    // Predicated region
    $region2: #{tpu_custom_call.1} parent=1 // pred_check
      _
    $region3: #{tpu_custom_call.1} parent=1 // pred_check_branch
      %13 = sbr.rel (0) target = $region5
    $region4: #{tpu_custom_call.1} parent=1 // pred_region
      %s15 = ssub.s32 128, 128
      %16 = vsyncadd [#allocation5], %s15
      %s18 = sshll.u32 [#allocation4], 4
      %s19 = int_to_ptr.vmem [resolvable:$true] %s18
      %21 = dma.hbm_to_vmem [thread:$0]  %s1, 128, %s19, [#allocation5]
    $region5: #{tpu_custom_call.1} parent=1 // pred_fallthru
      _
    // Predicated region
    $region6: #{tpu_custom_call.1} parent=1 // pred_check
      _
    $region7: #{tpu_custom_call.1} parent=1 // pred_check_branch
      %23 = sbr.rel (0) target = $region9
    $region8: #{tpu_custom_call.1} parent=1 // pred_region
      %s25 = ssub.s32 128, 128
      %26 = vsyncadd [#allocation8], %s25
      %s28 = sshll.u32 [#allocation7], 4
      %s29 = int_to_ptr.vmem [resolvable:$true] %s28
      %31 = dma.hbm_to_vmem [thread:$0]  %s2, 128, %s29, [#allocation8]
    $region9: #{tpu_custom_call.1} parent=1 // pred_fallthru
      _
    // Predicated region
    $region10: #{tpu_custom_call.1} parent=1 // pred_check
      _
    $region11: #{tpu_custom_call.1} parent=1 // pred_check_branch
      %33 = sbr.rel (0) target = $region13
    $region12: #{tpu_custom_call.1} parent=1 // pred_region
      %34 = dma.done [#allocation5], 128
    $region13: #{tpu_custom_call.1} parent=1 // pred_fallthru
      _
    // Predicated region
    $region14: #{tpu_custom_call.1} parent=1 // pred_check
      _
    $region15: #{tpu_custom_call.1} parent=1 // pred_check_branch
      %36 = sbr.rel (0) target = $region17
    $region16: #{tpu_custom_call.1} parent=1 // pred_region
      %37 = dma.done [#allocation8], 128
    $region17: #{tpu_custom_call.1} parent=1 // pred_fallthru
      _
    %v38 = vld [vmem:[#allocation7] sm:$0xff]
    %40 = vrot.lane.b32.xlu0 %v38, 32
    %v41 = vpop.permute.xlu0 %40
    %vm43 = vcmask 261120
    %v44 = vsel %vm43, %v38, %v41
    %v45 = vld [vmem:[#allocation4] sm:$0xff]
    %v46 = vadd.f32 %v45, %v44
    %s47 = smul.u32 0, 8
    %v48 = vlaneseq
    %v49 = vshrl.u32 %v48, 7
    %v50 = vstv %s47
    %v51 = vadd.s32 %v49, %v50
    %v52 = vlaneseq
    %v53 = vand.u32 %v52, 127
    %v54 = vmul.u32 %v51, 64
    %v55 = vadd.s32 %v54, %v53
    %s56 = sld [smem:[#allocation3]]
    %s57 = smul.u32 %s56, 2654435769
    %v58 = vstv %s57
    %v59 = vxor.u32 %v55, %v58
    %v60 = vshra.s32 %v59, 16
    %v61 = vand.u32 %v60, 65535
    %v62 = vxor.u32 %v59, %v61
    %v63 = vmul.u32 %v62, 2246822507
    %v64 = vshra.s32 %v63, 13
    %v65 = vand.u32 %v64, 524287
    %v66 = vxor.u32 %v63, %v65
    %v67 = vmul.u32 %v66, 3266489909
    %v68 = vshra.s32 %v67, 16
    %v69 = vand.u32 %v68, 65535
    %v70 = vxor.u32 %v67, %v69
    %vm71 = vcmp.ge.s32.totalorder %v70, 2576980378
    %v72 = vmul.f32 %v46, 1.1111112
    %v73 = vsel %vm71, %v72, 0.0
    %vm74 = vcmask 523264
    %75 = vst.msk [vmem:[#allocation9] sm:$0xff] %vm74, %v73
    // Predicated region
    $region18: #{tpu_custom_call.1} parent=1 // pred_check
      _
    $region19: #{tpu_custom_call.1} parent=1 // pred_check_branch
      %77 = sbr.rel (0) target = $region21
    $region20: #{tpu_custom_call.1} parent=1 // pred_region
      %s79 = ssub.s32 128, 128
      %80 = vsyncadd [#allocation6], %s79
      %s82 = sshll.u32 [#allocation9], 4
      %s83 = int_to_ptr.vmem [resolvable:$true] %s82
      %85 = dma.vmem_to_hbm [thread:$0]  %s83, 128, %s3, [#allocation6]
    $region21: #{tpu_custom_call.1} parent=1 // pred_fallthru
      _
    // Predicated region
    $region22: #{tpu_custom_call.1} parent=1 // pred_check
      _
    $region23: #{tpu_custom_call.1} parent=1 // pred_check_branch
      %87 = sbr.rel (0) target = $region25
    $region24: #{tpu_custom_call.1} parent=1 // pred_region
      %88 = dma.done [#allocation6], 128
    $region25: #{tpu_custom_call.1} parent=1 // pred_fallthru
      _
    %89 = vsyncpa [#allocation5], 1
    %90 = vsyncpa [#allocation8], 1
    %91 = vsyncpa [#allocation6], 1

</llo_original>
